<compile_context>
chip_gen: v7x
topology: tpu7x:2x2x1
jax: 0.10.0
libtpu: 0.0.40
codegen_flags: <defaults>
</compile_context>

<pallas_src>
import functools

import jax
import jax.numpy as jnp
from jax.experimental import pallas as pl
from jax.experimental.pallas import tpu as pltpu  # noqa: F401  (TPU backend)


LANE = 128  # TPU lane width; all layer widths are padded to a multiple of this.

# f32 keeps exact PyTorch-default numerics; at these tiny shapes the kernel is
# launch/overhead bound so the MXU rate is irrelevant.  For large shapes on
# v6e/v7x set this to jnp.bfloat16 (accumulation stays f32 via
# preferred_element_type) and store the weights in bf16 too.
MATMUL_DTYPE = jnp.float32


def _round_up(n, m=LANE):
    return ((n + m - 1) // m) * m


# ---------------------------------------------------------------------------
# Fused Pallas kernel (built per architecture = per number of hidden layers)
# ---------------------------------------------------------------------------
def _make_fused_mlp_kernel(n_hidden):
    """Kernel refs layout: x, (w_i, b_i)*n_hidden, w_out, b_out, o."""

    def kernel(*refs):
        x_ref = refs[0]
        o_ref = refs[-1]
        h = x_ref[...]
        for i in range(n_hidden):
            w_ref = refs[1 + 2 * i]
            b_ref = refs[2 + 2 * i]
            z = jnp.dot(
                h.astype(MATMUL_DTYPE),
                w_ref[...].astype(MATMUL_DTYPE),
                preferred_element_type=jnp.float32,
            )
            # BN scale/shift of the *previous* layer are already folded into
            # this layer's w/b; BN of this layer is folded into the next one.
            h = jnp.maximum(z + b_ref[...], 0.0)
        wo_ref = refs[1 + 2 * n_hidden]
        bo_ref = refs[2 + 2 * n_hidden]
        o_ref[...] = (
            jnp.dot(
                h.astype(MATMUL_DTYPE),
                wo_ref[...].astype(MATMUL_DTYPE),
                preferred_element_type=jnp.float32,
            )
            + bo_ref[...]
        )

    return kernel


# ---------------------------------------------------------------------------
# Wrapper: one pallas_call for the whole network
# ---------------------------------------------------------------------------
@functools.partial(jax.jit, static_argnames=("num_classes",))
def model_forward(x, hidden_ws, hidden_bs, w_out_p, b_out_p, num_classes):
    B = x.shape[0]
    h = x.reshape(B, -1).astype(jnp.float32)  # nn.Flatten()

    # Zero-pad the flattened features to the (lane-padded) first-layer width.
    in_pad = hidden_ws[0].shape[0]
    if h.shape[1] < in_pad:
        h = jnp.pad(h, ((0, 0), (0, in_pad - h.shape[1])))

    n_hidden = len(hidden_ws)
    n_pad = w_out_p.shape[1]
    itemsize = 4  # f32 operands

    args = [h]
    in_specs = [pl.BlockSpec(h.shape, lambda: (0, 0))]
    flops = 0
    bytes_accessed = h.size * itemsize
    for w, b in zip(hidden_ws, hidden_bs):
        b2 = b.reshape(1, -1)
        args += [w, b2]
        in_specs += [
            pl.BlockSpec(w.shape, lambda: (0, 0)),
            pl.BlockSpec(b2.shape, lambda: (0, 0)),
        ]
        flops += 2 * B * w.shape[0] * w.shape[1]
        bytes_accessed += (w.size + b2.size) * itemsize
    bo2 = b_out_p.reshape(1, -1)
    args += [w_out_p, bo2]
    in_specs += [
        pl.BlockSpec(w_out_p.shape, lambda: (0, 0)),
        pl.BlockSpec(bo2.shape, lambda: (0, 0)),
    ]
    flops += 2 * B * w_out_p.shape[0] * w_out_p.shape[1]
    bytes_accessed += (w_out_p.size + bo2.size + B * n_pad) * itemsize

    out_padded = pl.pallas_call(
        _make_fused_mlp_kernel(n_hidden),
        out_shape=jax.ShapeDtypeStruct((B, n_pad), jnp.float32),
        in_specs=in_specs,
        out_specs=pl.BlockSpec((B, n_pad), lambda: (0, 0)),
        cost_estimate=pl.CostEstimate(
            flops=flops, transcendentals=0, bytes_accessed=bytes_accessed
        ),
    )(*args)

    # Dropout(eval) == identity.  Slice away the lane padding of the classifier.
    return out_padded[:, :num_classes]


# ---------------------------------------------------------------------------
# Parameter construction (mirrors PyTorch layer shapes; eval-mode BN params)
# ---------------------------------------------------------------------------
def init_params(key, input_size, hidden_sizes, num_classes, bn_eps=1e-5):
    params = []
    prev = input_size
    for hsz in hidden_sizes:
        key, kw, kb, kg, kbt, km, kv = jax.random.split(key, 7)
        bound = 1.0 / jnp.sqrt(prev)
        # stored as [in, out] so the kernel computes x @ W directly
        w = jax.random.uniform(kw, (prev, hsz), jnp.float32, -bound, bound)
        b = jax.random.uniform(kb, (hsz,), jnp.float32, -bound, bound)
        # Non-trivial eval-mode BN params (gamma may be negative) to exercise
        # the exact fold; PyTorch defaults (1, 0, 0, 1) are a special case.
        gamma = jax.random.normal(kg, (hsz,), jnp.float32)
        beta = 0.1 * jax.random.normal(kbt, (hsz,), jnp.float32)
        run_mean = 0.1 * jax.random.normal(km, (hsz,), jnp.float32)
        run_var = jax.random.uniform(kv, (hsz,), jnp.float32, 0.5, 1.5)
        scale = gamma / jnp.sqrt(run_var + bn_eps)
        shift = beta - run_mean * scale
        params.append(dict(w=w, b=b, scale=scale, shift=shift))
        prev = hsz
    key, kw, kb = jax.random.split(key, 3)
    bound = 1.0 / jnp.sqrt(prev)
    w_out = jax.random.uniform(kw, (prev, num_classes), jnp.float32, -bound, bound)
    b_out = jax.random.uniform(kb, (num_classes,), jnp.float32, -bound, bound)
    return params, (w_out, b_out)


def fold_params(hidden_params, out_params):
    """Fold eval-mode BN into the *next* Linear layer and lane-pad everything.

    BN(relu(z)) = scale*relu(z) + shift feeds layer i+1:
        (scale*relu + shift) @ W + b = relu @ (scale[:,None]*W) + (shift @ W + b)
    which is exact for any gamma sign.  Afterwards every layer boundary is
    zero-padded to a multiple of 128 lanes (padded activations are exactly 0
    because relu(x@0 + 0) = 0, and padded weight rows contribute nothing).
    """
    w_out, b_out = out_params

    folded_ws, folded_bs = [], []
    carry_scale, carry_shift = None, None
    for p in hidden_params:
        w, b = p["w"], p["b"]
        if carry_scale is not None:
            b = b + carry_shift @ w
            w = carry_scale[:, None] * w
        folded_ws.append(w)
        folded_bs.append(b)
        carry_scale, carry_shift = p["scale"], p["shift"]
    if carry_scale is not None:
        b_out = b_out + carry_shift @ w_out
        w_out = carry_scale[:, None] * w_out

    # Lane-pad every layer boundary to a multiple of 128.
    padded_ws, padded_bs = [], []
    prev_pad = _round_up(folded_ws[0].shape[0])
    for w, b in zip(folded_ws, folded_bs):
        n = w.shape[1]
        n_p = _round_up(n)
        wp = jnp.zeros((prev_pad, n_p), jnp.float32).at[: w.shape[0], :n].set(w)
        bp = jnp.zeros((n_p,), jnp.float32).at[:n].set(b)
        padded_ws.append(wp)
        padded_bs.append(bp)
        prev_pad = n_p

    nc = w_out.shape[1]
    nc_p = _round_up(nc)
    w_out_p = (
        jnp.zeros((prev_pad, nc_p), jnp.float32).at[: w_out.shape[0], :nc].set(w_out)
    )
    b_out_p = jnp.zeros((nc_p,), jnp.float32).at[:nc].set(b_out)
    return tuple(padded_ws), tuple(padded_bs), w_out_p, b_out_p


# ---------------------------------------------------------------------------
# Pure-JAX reference (original, un-folded, un-padded semantics)
# ---------------------------------------------------------------------------
def reference_forward(x, hidden_params, out_params):
    B = x.shape[0]
    h = x.reshape(B, -1).astype(jnp.float32)
    for p in hidden_params:
        h = jnp.maximum(h @ p["w"] + p["b"], 0.0) * p["scale"] + p["shift"]
    w_out, b_out = out_params
    return h @ w_out + b_out


# ---------------------------------------------------------------------------
if __name__ == "__main__":
    key = jax.random.PRNGKey(0)
    key, kx, kp = jax.random.split(key, 3)

    # Small shapes consistent with the module's Flatten -> MLP structure.
    B, C, H, W = 8, 4, 16, 16               # input tensor [8, 4, 16, 16]
    input_size = C * H * W                  # 1024
    hidden_sizes = [128, 64]                # 64-wide layer exercises lane padding
    num_classes = 16

    x = jax.random.normal(kx, (B, C, H, W), jnp.float32)
    hidden_params, out_params = init_params(kp, input_size, hidden_sizes, num_classes)
    hidden_ws, hidden_bs, w_out_p, b_out_p = fold_params(hidden_params, out_params)

    out = model_forward(x, hidden_ws, hidden_bs, w_out_p, b_out_p, num_classes)
    out = jax.block_until_ready(out)

    ref = reference_forward(x, hidden_params, out_params)
    assert out.shape == (B, num_classes), out.shape
    assert jnp.allclose(out, ref, atol=1e-4, rtol=1e-4), float(
        jnp.max(jnp.abs(out - ref))
    )

    print("KERNEL_OK")
</pallas_src>

<mosaic_0001>
module attributes {stable_mosaic.version = 11 : i64} {
  func.func @kernel(%arg0: memref<8x1024xf32, #tpu.memory_space<vmem>>, %arg1: memref<1024x128xf32, #tpu.memory_space<vmem>>, %arg2: memref<1x128xf32, #tpu.memory_space<vmem>>, %arg3: memref<128x128xf32, #tpu.memory_space<vmem>>, %arg4: memref<1x128xf32, #tpu.memory_space<vmem>>, %arg5: memref<128x128xf32, #tpu.memory_space<vmem>>, %arg6: memref<1x128xf32, #tpu.memory_space<vmem>>, %arg7: memref<8x128xf32, #tpu.memory_space<vmem>>) attributes {dimension_semantics = [], scalar_prefetch = 0 : i64, scratch_operands = 0 : i64, tpu.core_type = #tpu.core_type<tc>} {
    %c0 = arith.constant 0 : index
    %c0_0 = arith.constant 0 : index
    %0 = vector.load %arg0[%c0, %c0_0] : memref<8x1024xf32, #tpu.memory_space<vmem>>, vector<8x1024xf32>
    %c0_1 = arith.constant 0 : index
    %c0_2 = arith.constant 0 : index
    %1 = vector.load %arg1[%c0_1, %c0_2] : memref<1024x128xf32, #tpu.memory_space<vmem>>, vector<1024x128xf32>
    %cst = arith.constant dense<0.000000e+00> : vector<8x128xf32>
    %2 = tpu.matmul %0, %1, %cst {dimension_numbers = #tpu.dot_dimension_numbers<[1], [0], [0], [1], [0, 0, 1, 1], [], []>} : vector<8x1024xf32>, vector<1024x128xf32>, vector<8x128xf32> -> vector<8x128xf32>
    %c0_3 = arith.constant 0 : index
    %c0_4 = arith.constant 0 : index
    %3 = vector.load %arg2[%c0_3, %c0_4] : memref<1x128xf32, #tpu.memory_space<vmem>>, vector<1x128xf32>
    %4 = vector.broadcast %3 : vector<1x128xf32> to vector<8x128xf32>
    %5 = arith.addf %2, %4 : vector<8x128xf32>
    %cst_5 = arith.constant 0.000000e+00 : f32
    %6 = vector.broadcast %cst_5 : f32 to vector<8x128xf32>
    %7 = arith.maximumf %5, %6 : vector<8x128xf32>
    %c0_6 = arith.constant 0 : index
    %c0_7 = arith.constant 0 : index
    %8 = vector.load %arg3[%c0_6, %c0_7] : memref<128x128xf32, #tpu.memory_space<vmem>>, vector<128x128xf32>
    %cst_8 = arith.constant dense<0.000000e+00> : vector<8x128xf32>
    %9 = tpu.matmul %7, %8, %cst_8 {dimension_numbers = #tpu.dot_dimension_numbers<[1], [0], [0], [1], [0, 0, 1, 1], [], []>} : vector<8x128xf32>, vector<128x128xf32>, vector<8x128xf32> -> vector<8x128xf32>
    %c0_9 = arith.constant 0 : index
    %c0_10 = arith.constant 0 : index
    %10 = vector.load %arg4[%c0_9, %c0_10] : memref<1x128xf32, #tpu.memory_space<vmem>>, vector<1x128xf32>
    %11 = vector.broadcast %10 : vector<1x128xf32> to vector<8x128xf32>
    %12 = arith.addf %9, %11 : vector<8x128xf32>
    %cst_11 = arith.constant 0.000000e+00 : f32
    %13 = vector.broadcast %cst_11 : f32 to vector<8x128xf32>
    %14 = arith.maximumf %12, %13 : vector<8x128xf32>
    %c0_12 = arith.constant 0 : index
    %c0_13 = arith.constant 0 : index
    %15 = vector.load %arg5[%c0_12, %c0_13] : memref<128x128xf32, #tpu.memory_space<vmem>>, vector<128x128xf32>
    %cst_14 = arith.constant dense<0.000000e+00> : vector<8x128xf32>
    %16 = tpu.matmul %14, %15, %cst_14 {dimension_numbers = #tpu.dot_dimension_numbers<[1], [0], [0], [1], [0, 0, 1, 1], [], []>} : vector<8x128xf32>, vector<128x128xf32>, vector<8x128xf32> -> vector<8x128xf32>
    %c0_15 = arith.constant 0 : index
    %c0_16 = arith.constant 0 : index
    %17 = vector.load %arg6[%c0_15, %c0_16] : memref<1x128xf32, #tpu.memory_space<vmem>>, vector<1x128xf32>
    %18 = vector.broadcast %17 : vector<1x128xf32> to vector<8x128xf32>
    %19 = arith.addf %16, %18 : vector<8x128xf32>
    %c0_17 = arith.constant 0 : index
    %c0_18 = arith.constant 0 : index
    %20 = vector.load %arg7[%c0_17, %c0_18] : memref<8x128xf32, #tpu.memory_space<vmem>>, vector<8x128xf32>
    tpu.vector_store %arg7[%c0_17, %c0_18], %19 {strides = array<i32>} : memref<8x128xf32, #tpu.memory_space<vmem>>, vector<8x128xf32>,
    return
  }
}

</mosaic_0001>

<llo_original>
// kernel: model_forward.1
$region0: #{model_forward.1}
  #allocation0 [shape = 'u32[]', space=smem, size = 0x4, offset = 0x4, fixed_abs, tag = 'smem constant byte address 0x4 - core index']
  #allocation1 [shape = 'u32[144,128]{1,0:T(1,128)}', space=vmem, size = 0x12000, scoped, tag = 'internal scratch']
  %s0 = inlined_call_operand.vmem [shape: f32[8,1024], index: 0, kind: input, shape index: {}]
  %s1 = inlined_call_operand.hbm [shape: f32[1024,128], index: 1, kind: input, shape index: {}]
  %s2 = inlined_call_operand.vmem [shape: f32[1,128], index: 2, kind: input, shape index: {}]
  %s3 = inlined_call_operand.vmem [shape: f32[128,128], index: 3, kind: input, shape index: {}]
  %s4 = inlined_call_operand.vmem [shape: f32[1,128], index: 4, kind: input, shape index: {}]
  %s5 = inlined_call_operand.vmem [shape: f32[128,128], index: 5, kind: input, shape index: {}]
  %s6 = inlined_call_operand.vmem [shape: f32[1,128], index: 6, kind: input, shape index: {}]
  %s7 = inlined_call_operand.hbm [shape: f32[8,128], index: 7, kind: output, shape index: {}]
  %s8 = sld [smem:[#allocation0]]
  $region42: #{model_forward.1} parent=0
    _
  %s10 = ssub.s32 1, %s8
  %s11 = scalar_select 0, %s10, %s8
  $region1: #{model_forward.1} parent=0
    #allocation2 [shape = 'u8[524288]{0}', space=vmem, size = 0x80000, scoped, tag = 'input window, operand 1, single buffered']
    #allocation3 [shape = 's32[1]{0}', space=sflag, size = 0x4, scoped, tag = 'scoped memory for model_forward.1']
    #allocation4 [shape = 's32[1]{0}', space=sflag, size = 0x4, scoped, tag = 'scoped memory for model_forward.1']
    #allocation5 [shape = 'u8[4096]{0}', space=vmem, size = 0x1000, scoped, tag = 'output window, operand 0, single buffered']
    %12 = vsyncpa [#allocation3], 0
    %13 = vsyncpa [#allocation4], 0
    // Predicated region
    $region2: #{model_forward.1} parent=1 // pred_check
      _
    $region3: #{model_forward.1} parent=1 // pred_check_branch
      %15 = sbr.rel (0) target = $region5
    $region4: #{model_forward.1} parent=1 // pred_region
      _
    $region5: #{model_forward.1} parent=1 // pred_fallthru
      _
    // Predicated region
    $region6: #{model_forward.1} parent=1 // pred_check
      _
    $region7: #{model_forward.1} parent=1 // pred_check_branch
      %17 = sbr.rel (0) target = $region9
    $region8: #{model_forward.1} parent=1 // pred_region
      %s19 = ssub.s32 16384, 16384
      %20 = vsyncadd [#allocation3], %s19
      %s21 = sshll.u32 [#allocation2], 4
      %s22 = int_to_ptr.vmem [resolvable:$true] %s21
      %27 = dma.hbm_to_vmem [thread:$0]  %s1, 16384, %s22, [#allocation3], 128, 128, 8
    $region9: #{model_forward.1} parent=1 // pred_fallthru
      _
    // Predicated region
    $region10: #{model_forward.1} parent=1 // pred_check
      _
    $region11: #{model_forward.1} parent=1 // pred_check_branch
      %29 = sbr.rel (0) target = $region13
    $region12: #{model_forward.1} parent=1 // pred_region
      _
    $region13: #{model_forward.1} parent=1 // pred_fallthru
      _
    // Predicated region
    $region14: #{model_forward.1} parent=1 // pred_check
      _
    $region15: #{model_forward.1} parent=1 // pred_check_branch
      %31 = sbr.rel (0) target = $region17
    $region16: #{model_forward.1} parent=1 // pred_region
      _
    $region17: #{model_forward.1} parent=1 // pred_fallthru
      _
    // Predicated region
    $region18: #{model_forward.1} parent=1 // pred_check
      _
    $region19: #{model_forward.1} parent=1 // pred_check_branch
      %33 = sbr.rel (0) target = $region21
    $region20: #{model_forward.1} parent=1 // pred_region
      _
    $region21: #{model_forward.1} parent=1 // pred_fallthru
      _
    // Predicated region
    $region22: #{model_forward.1} parent=1 // pred_check
      _
    $region23: #{model_forward.1} parent=1 // pred_check_branch
      %35 = sbr.rel (0) target = $region25
    $region24: #{model_forward.1} parent=1 // pred_region
      _
    $region25: #{model_forward.1} parent=1 // pred_fallthru
      _
    // Predicated region
    $region26: #{model_forward.1} parent=1 // pred_check
      _
    $region27: #{model_forward.1} parent=1 // pred_check_branch
      %37 = sbr.rel (0) target = $region29
    $region28: #{model_forward.1} parent=1 // pred_region
      _
    $region29: #{model_forward.1} parent=1 // pred_fallthru
      _
    // Predicated region
    $region30: #{model_forward.1} parent=1 // pred_check
      _
    $region31: #{model_forward.1} parent=1 // pred_check_branch
      %39 = sbr.rel (0) target = $region33
    $region32: #{model_forward.1} parent=1 // pred_region
      %40 = dma.done [#allocation3], 16384
    $region33: #{model_forward.1} parent=1 // pred_fallthru
      _
    %v41 = vld [vmem:[%s0] sm:$0xff]
    %v42 = vld [vmem:[%s0 + $0x8] sm:$0xff]
    %v43 = vld [vmem:[%s0 + $0x10] sm:$0xff]
    %v44 = vld [vmem:[%s0 + $0x18] sm:$0xff]
    %v45 = vld [vmem:[%s0 + $0x20] sm:$0xff]
    %v46 = vld [vmem:[%s0 + $0x28] sm:$0xff]
    %v47 = vld [vmem:[%s0 + $0x30] sm:$0xff]
    %v48 = vld [vmem:[%s0 + $0x38] sm:$0xff]
    %v49 = vld [vmem:[#allocation2] sm:$0xff]
    %v50 = vld [vmem:[#allocation2 + $0x8] sm:$0xff]
    %v51 = vld [vmem:[#allocation2 + $0x10] sm:$0xff]
    %v52 = vld [vmem:[#allocation2 + $0x18] sm:$0xff]
    %v53 = vld [vmem:[#allocation2 + $0x20] sm:$0xff]
    %v54 = vld [vmem:[#allocation2 + $0x28] sm:$0xff]
    %v55 = vld [vmem:[#allocation2 + $0x30] sm:$0xff]
    %v56 = vld [vmem:[#allocation2 + $0x38] sm:$0xff]
    %v57 = vld [vmem:[#allocation2 + $0x40] sm:$0xff]
    %v58 = vld [vmem:[#allocation2 + $0x48] sm:$0xff]
    %v59 = vld [vmem:[#allocation2 + $0x50] sm:$0xff]
    %v60 = vld [vmem:[#allocation2 + $0x58] sm:$0xff]
    %v61 = vld [vmem:[#allocation2 + $0x60] sm:$0xff]
    %v62 = vld [vmem:[#allocation2 + $0x68] sm:$0xff]
    %v63 = vld [vmem:[#allocation2 + $0x70] sm:$0xff]
    %v64 = vld [vmem:[#allocation2 + $0x78] sm:$0xff]
    %v65 = vld [vmem:[#allocation2 + $0x80] sm:$0xff]
    %v66 = vld [vmem:[#allocation2 + $0x88] sm:$0xff]
    %v67 = vld [vmem:[#allocation2 + $0x90] sm:$0xff]
    %v68 = vld [vmem:[#allocation2 + $0x98] sm:$0xff]
    %v69 = vld [vmem:[#allocation2 + $0xa0] sm:$0xff]
    %v70 = vld [vmem:[#allocation2 + $0xa8] sm:$0xff]
    %v71 = vld [vmem:[#allocation2 + $0xb0] sm:$0xff]
    %v72 = vld [vmem:[#allocation2 + $0xb8] sm:$0xff]
    %v73 = vld [vmem:[#allocation2 + $0xc0] sm:$0xff]
    %v74 = vld [vmem:[#allocation2 + $0xc8] sm:$0xff]
    %v75 = vld [vmem:[#allocation2 + $0xd0] sm:$0xff]
    %v76 = vld [vmem:[#allocation2 + $0xd8] sm:$0xff]
    %v77 = vld [vmem:[#allocation2 + $0xe0] sm:$0xff]
    %v78 = vld [vmem:[#allocation2 + $0xe8] sm:$0xff]
    %v79 = vld [vmem:[#allocation2 + $0xf0] sm:$0xff]
    %v80 = vld [vmem:[#allocation2 + $0xf8] sm:$0xff]
    %v81 = vld [vmem:[#allocation2 + $0x100] sm:$0xff]
    %v82 = vld [vmem:[#allocation2 + $0x108] sm:$0xff]
    %v83 = vld [vmem:[#allocation2 + $0x110] sm:$0xff]
    %v84 = vld [vmem:[#allocation2 + $0x118] sm:$0xff]
    %v85 = vld [vmem:[#allocation2 + $0x120] sm:$0xff]
    %v86 = vld [vmem:[#allocation2 + $0x128] sm:$0xff]
    %v87 = vld [vmem:[#allocation2 + $0x130] sm:$0xff]
    %v88 = vld [vmem:[#allocation2 + $0x138] sm:$0xff]
    %v89 = vld [vmem:[#allocation2 + $0x140] sm:$0xff]
    %v90 = vld [vmem:[#allocation2 + $0x148] sm:$0xff]
    %v91 = vld [vmem:[#allocation2 + $0x150] sm:$0xff]
    %v92 = vld [vmem:[#allocation2 + $0x158] sm:$0xff]
    %v93 = vld [vmem:[#allocation2 + $0x160] sm:$0xff]
    %v94 = vld [vmem:[#allocation2 + $0x168] sm:$0xff]
    %v95 = vld [vmem:[#allocation2 + $0x170] sm:$0xff]
    %v96 = vld [vmem:[#allocation2 + $0x178] sm:$0xff]
    %v97 = vld [vmem:[#allocation2 + $0x180] sm:$0xff]
    %v98 = vld [vmem:[#allocation2 + $0x188] sm:$0xff]
    %v99 = vld [vmem:[#allocation2 + $0x190] sm:$0xff]
    %v100 = vld [vmem:[#allocation2 + $0x198] sm:$0xff]
    %v101 = vld [vmem:[#allocation2 + $0x1a0] sm:$0xff]
    %v102 = vld [vmem:[#allocation2 + $0x1a8] sm:$0xff]
    %v103 = vld [vmem:[#allocation2 + $0x1b0] sm:$0xff]
    %v104 = vld [vmem:[#allocation2 + $0x1b8] sm:$0xff]
    %v105 = vld [vmem:[#allocation2 + $0x1c0] sm:$0xff]
    %v106 = vld [vmem:[#allocation2 + $0x1c8] sm:$0xff]
    %v107 = vld [vmem:[#allocation2 + $0x1d0] sm:$0xff]
    %v108 = vld [vmem:[#allocation2 + $0x1d8] sm:$0xff]
    %v109 = vld [vmem:[#allocation2 + $0x1e0] sm:$0xff]
    %v110 = vld [vmem:[#allocation2 + $0x1e8] sm:$0xff]
    %v111 = vld [vmem:[#allocation2 + $0x1f0] sm:$0xff]
    %v112 = vld [vmem:[#allocation2 + $0x1f8] sm:$0xff]
    %v113 = vld [vmem:[#allocation2 + $0x200] sm:$0xff]
    %v114 = vld [vmem:[#allocation2 + $0x208] sm:$0xff]
    %v115 = vld [vmem:[#allocation2 + $0x210] sm:$0xff]
    %v116 = vld [vmem:[#allocation2 + $0x218] sm:$0xff]
    %v117 = vld [vmem:[#allocation2 + $0x220] sm:$0xff]
    %v118 = vld [vmem:[#allocation2 + $0x228] sm:$0xff]
    %v119 = vld [vmem:[#allocation2 + $0x230] sm:$0xff]
    %v120 = vld [vmem:[#allocation2 + $0x238] sm:$0xff]
    %v121 = vld [vmem:[#allocation2 + $0x240] sm:$0xff]
    %v122 = vld [vmem:[#allocation2 + $0x248] sm:$0xff]
    %v123 = vld [vmem:[#allocation2 + $0x250] sm:$0xff]
    %v124 = vld [vmem:[#allocation2 + $0x258] sm:$0xff]
    %v125 = vld [vmem:[#allocation2 + $0x260] sm:$0xff]
    %v126 = vld [vmem:[#allocation2 + $0x268] sm:$0xff]
    %v127 = vld [vmem:[#allocation2 + $0x270] sm:$0xff]
    %v128 = vld [vmem:[#allocation2 + $0x278] sm:$0xff]
    %v129 = vld [vmem:[#allocation2 + $0x280] sm:$0xff]
    %v130 = vld [vmem:[#allocation2 + $0x288] sm:$0xff]
    %v131 = vld [vmem:[#allocation2 + $0x290] sm:$0xff]
    %v132 = vld [vmem:[#allocation2 + $0x298] sm:$0xff]
    %v133 = vld [vmem:[#allocation2 + $0x2a0] sm:$0xff]
    %v134 = vld [vmem:[#allocation2 + $0x2a8] sm:$0xff]
    %v135 = vld [vmem:[#allocation2 + $0x2b0] sm:$0xff]
    %v136 = vld [vmem:[#allocation2 + $0x2b8] sm:$0xff]
    %v137 = vld [vmem:[#allocation2 + $0x2c0] sm:$0xff]
    %v138 = vld [vmem:[#allocation2 + $0x2c8] sm:$0xff]
    %v139 = vld [vmem:[#allocation2 + $0x2d0] sm:$0xff]
    %v140 = vld [vmem:[#allocation2 + $0x2d8] sm:$0xff]
    %v141 = vld [vmem:[#allocation2 + $0x2e0] sm:$0xff]
    %v142 = vld [vmem:[#allocation2 + $0x2e8] sm:$0xff]
    %v143 = vld [vmem:[#allocation2 + $0x2f0] sm:$0xff]
    %v144 = vld [vmem:[#allocation2 + $0x2f8] sm:$0xff]
    %v145 = vld [vmem:[#allocation2 + $0x300] sm:$0xff]
    %v146 = vld [vmem:[#allocation2 + $0x308] sm:$0xff]
    %v147 = vld [vmem:[#allocation2 + $0x310] sm:$0xff]
    %v148 = vld [vmem:[#allocation2 + $0x318] sm:$0xff]
    %v149 = vld [vmem:[#allocation2 + $0x320] sm:$0xff]
    %v150 = vld [vmem:[#allocation2 + $0x328] sm:$0xff]
    %v151 = vld [vmem:[#allocation2 + $0x330] sm:$0xff]
    %v152 = vld [vmem:[#allocation2 + $0x338] sm:$0xff]
    %v153 = vld [vmem:[#allocation2 + $0x340] sm:$0xff]
    %v154 = vld [vmem:[#allocation2 + $0x348] sm:$0xff]
    %v155 = vld [vmem:[#allocation2 + $0x350] sm:$0xff]
    %v156 = vld [vmem:[#allocation2 + $0x358] sm:$0xff]
    %v157 = vld [vmem:[#allocation2 + $0x360] sm:$0xff]
    %v158 = vld [vmem:[#allocation2 + $0x368] sm:$0xff]
    %v159 = vld [vmem:[#allocation2 + $0x370] sm:$0xff]
    %v160 = vld [vmem:[#allocation2 + $0x378] sm:$0xff]
    %v161 = vld [vmem:[#allocation2 + $0x380] sm:$0xff]
    %v162 = vld [vmem:[#allocation2 + $0x388] sm:$0xff]
    %v163 = vld [vmem:[#allocation2 + $0x390] sm:$0xff]
    %v164 = vld [vmem:[#allocation2 + $0x398] sm:$0xff]
    %v165 = vld [vmem:[#allocation2 + $0x3a0] sm:$0xff]
    %v166 = vld [vmem:[#allocation2 + $0x3a8] sm:$0xff]
    %v167 = vld [vmem:[#allocation2 + $0x3b0] sm:$0xff]
    %v168 = vld [vmem:[#allocation2 + $0x3b8] sm:$0xff]
    %v169 = vld [vmem:[#allocation2 + $0x3c0] sm:$0xff]
    %v170 = vld [vmem:[#allocation2 + $0x3c8] sm:$0xff]
    %v171 = vld [vmem:[#allocation2 + $0x3d0] sm:$0xff]
    %v172 = vld [vmem:[#allocation2 + $0x3d8] sm:$0xff]
    %v173 = vld [vmem:[#allocation2 + $0x3e0] sm:$0xff]
    %v174 = vld [vmem:[#allocation2 + $0x3e8] sm:$0xff]
    %v175 = vld [vmem:[#allocation2 + $0x3f0] sm:$0xff]
    %v176 = vld [vmem:[#allocation2 + $0x3f8] sm:$0xff]
    %v177 = vld [vmem:[%s2] sm:$0x1]
    %v179 = vlaneseq
    %v180 = vshrl.u32 %v179, 7
    %v181 = vsub.s32 0, %v180
    %v182 = vrot.slane %v177, %v181
    %184 = vmatprep.subr.mxu0 0.0
    %185 = vmatpush1.msra.mxu0 %v49
    %186 = vmatprep.subr.mxu0 0.0
    %187 = vmatpush1.msra.mxu0 %v50
    %188 = vmatprep.subr.mxu0 0.0
    %189 = vmatpush1.msra.mxu0 %v51
    %190 = vmatprep.subr.mxu0 0.0
    %191 = vmatpush1.msra.mxu0 %v52
    %192 = vmatprep.subr.mxu0 0.0
    %193 = vmatpush1.msra.mxu0 %v53
    %194 = vmatprep.subr.mxu0 0.0
    %195 = vmatpush1.msra.mxu0 %v54
    %196 = vmatprep.subr.mxu0 0.0
    %197 = vmatpush1.msra.mxu0 %v55
    %198 = vmatprep.subr.mxu0 0.0
    %199 = vmatpush1.msra.mxu0 %v56
    %200 = vmatprep.subr.mxu0 0.0
    %201 = vmatpush1.msra.mxu0 %v57
    %202 = vmatprep.subr.mxu0 0.0
    %203 = vmatpush1.msra.mxu0 %v58
    %204 = vmatprep.subr.mxu0 0.0
    %205 = vmatpush1.msra.mxu0 %v59
    %206 = vmatprep.subr.mxu0 0.0
    %207 = vmatpush1.msra.mxu0 %v60
    %208 = vmatprep.subr.mxu0 0.0
    %209 = vmatpush1.msra.mxu0 %v61
    %210 = vmatprep.subr.mxu0 0.0
    %211 = vmatpush1.msra.mxu0 %v62
    %212 = vmatprep.subr.mxu0 0.0
    %213 = vmatpush1.msra.mxu0 %v63
    %214 = vmatprep.subr.mxu0 0.0
    %215 = vmatpush1.msra.mxu0 %v64
    %216 = vmatprep.subr.mxu0 0.0
    %217 = vmatpush1.msra.mxu0 %v65
    %218 = vmatprep.subr.mxu0 0.0
    %219 = vmatpush1.msra.mxu0 %v66
    %220 = vmatprep.subr.mxu0 0.0
    %221 = vmatpush1.msra.mxu0 %v67
    %222 = vmatprep.subr.mxu0 0.0
    %223 = vmatpush1.msra.mxu0 %v68
    %224 = vmatprep.subr.mxu0 0.0
    %225 = vmatpush1.msra.mxu0 %v69
    %226 = vmatprep.subr.mxu0 0.0
    %227 = vmatpush1.msra.mxu0 %v70
    %228 = vmatprep.subr.mxu0 0.0
    %229 = vmatpush1.msra.mxu0 %v71
    %230 = vmatprep.subr.mxu0 0.0
    %231 = vmatpush1.msra.mxu0 %v72
    %232 = vmatprep.subr.mxu0 0.0
    %233 = vmatpush1.msra.mxu0 %v73
    %234 = vmatprep.subr.mxu0 0.0
    %235 = vmatpush1.msra.mxu0 %v74
    %236 = vmatprep.subr.mxu0 0.0
    %237 = vmatpush1.msra.mxu0 %v75
    %238 = vmatprep.subr.mxu0 0.0
    %239 = vmatpush1.msra.mxu0 %v76
    %240 = vmatprep.subr.mxu0 0.0
    %241 = vmatpush1.msra.mxu0 %v77
    %242 = vmatprep.subr.mxu0 0.0
    %243 = vmatpush1.msra.mxu0 %v78
    %244 = vmatprep.subr.mxu0 0.0
    %245 = vmatpush1.msra.mxu0 %v79
    %246 = vmatprep.subr.mxu0 0.0
    %247 = vmatpush1.msra.mxu0 %v80
    %248 = vmatprep.mubr.f32.mxu0 %v42
    %249 = vmatmul.mubr.f32.gmra.mrb[0].mxu0 %v41
    %v250 = vpop.f32.mrb[0].mxu0
    %v251 = vadd.f32 %v182, %v250
    %v252 = vpop.f32.mrb[0].mxu0
    %253 = vdwg.mxu0
    %254 = vmatprep.subr.mxu0 0.0
    %255 = vmatpush1.msra.mxu0 %v81
    %256 = vmatprep.subr.mxu0 0.0
    %257 = vmatpush1.msra.mxu0 %v82
    %258 = vmatprep.subr.mxu0 0.0
    %259 = vmatpush1.msra.mxu0 %v83
    %260 = vmatprep.subr.mxu0 0.0
    %261 = vmatpush1.msra.mxu0 %v84
    %262 = vmatprep.subr.mxu0 0.0
    %263 = vmatpush1.msra.mxu0 %v85
    %264 = vmatprep.subr.mxu0 0.0
    %265 = vmatpush1.msra.mxu0 %v86
    %266 = vmatprep.subr.mxu0 0.0
    %267 = vmatpush1.msra.mxu0 %v87
    %268 = vmatprep.subr.mxu0 0.0
    %269 = vmatpush1.msra.mxu0 %v88
    %270 = vmatprep.subr.mxu0 0.0
    %271 = vmatpush1.msra.mxu0 %v89
    %272 = vmatprep.subr.mxu0 0.0
    %273 = vmatpush1.msra.mxu0 %v90
    %274 = vmatprep.subr.mxu0 0.0
    %275 = vmatpush1.msra.mxu0 %v91
    %276 = vmatprep.subr.mxu0 0.0
    %277 = vmatpush1.msra.mxu0 %v92
    %278 = vmatprep.subr.mxu0 0.0
    %279 = vmatpush1.msra.mxu0 %v93
    %280 = vmatprep.subr.mxu0 0.0
    %281 = vmatpush1.msra.mxu0 %v94
    %282 = vmatprep.subr.mxu0 0.0
    %283 = vmatpush1.msra.mxu0 %v95
    %284 = vmatprep.subr.mxu0 0.0
    %285 = vmatpush1.msra.mxu0 %v96
    %286 = vmatprep.subr.mxu0 0.0
    %287 = vmatpush1.msra.mxu0 %v97
    %288 = vmatprep.subr.mxu0 0.0
    %289 = vmatpush1.msra.mxu0 %v98
    %290 = vmatprep.subr.mxu0 0.0
    %291 = vmatpush1.msra.mxu0 %v99
    %292 = vmatprep.subr.mxu0 0.0
    %293 = vmatpush1.msra.mxu0 %v100
    %294 = vmatprep.subr.mxu0 0.0
    %295 = vmatpush1.msra.mxu0 %v101
    %296 = vmatprep.subr.mxu0 0.0
    %297 = vmatpush1.msra.mxu0 %v102
    %298 = vmatprep.subr.mxu0 0.0
    %299 = vmatpush1.msra.mxu0 %v103
    %300 = vmatprep.subr.mxu0 0.0
    %301 = vmatpush1.msra.mxu0 %v104
    %302 = vmatprep.subr.mxu0 0.0
    %303 = vmatpush1.msra.mxu0 %v105
    %304 = vmatprep.subr.mxu0 0.0
    %305 = vmatpush1.msra.mxu0 %v106
    %306 = vmatprep.subr.mxu0 0.0
    %307 = vmatpush1.msra.mxu0 %v107
    %308 = vmatprep.subr.mxu0 0.0
    %309 = vmatpush1.msra.mxu0 %v108
    %310 = vmatprep.subr.mxu0 0.0
    %311 = vmatpush1.msra.mxu0 %v109
    %312 = vmatprep.subr.mxu0 0.0
    %313 = vmatpush1.msra.mxu0 %v110
    %314 = vmatprep.subr.mxu0 0.0
    %315 = vmatpush1.msra.mxu0 %v111
    %316 = vmatprep.subr.mxu0 0.0
    %317 = vmatpush1.msra.mxu0 %v112
    %318 = vmatprep.mubr.f32.mxu0 %v44
    %319 = vmatmul.mubr.f32.gmra.mrb[0].mxu0 %v43
    %v320 = vpop.f32.mrb[0].mxu0
    %v321 = vadd.f32 %v251, %v320
    %v322 = vpop.f32.mrb[0].mxu0
    %323 = vdwg.mxu0
    %324 = vmatprep.subr.mxu0 0.0
    %325 = vmatpush1.msra.mxu0 %v113
    %326 = vmatprep.subr.mxu0 0.0
    %327 = vmatpush1.msra.mxu0 %v114
    %328 = vmatprep.subr.mxu0 0.0
    %329 = vmatpush1.msra.mxu0 %v115
    %330 = vmatprep.subr.mxu0 0.0
    %331 = vmatpush1.msra.mxu0 %v116
    %332 = vmatprep.subr.mxu0 0.0
    %333 = vmatpush1.msra.mxu0 %v117
    %334 = vmatprep.subr.mxu0 0.0
    %335 = vmatpush1.msra.mxu0 %v118
    %336 = vmatprep.subr.mxu0 0.0
    %337 = vmatpush1.msra.mxu0 %v119
    %338 = vmatprep.subr.mxu0 0.0
    %339 = vmatpush1.msra.mxu0 %v120
    %340 = vmatprep.subr.mxu0 0.0
    %341 = vmatpush1.msra.mxu0 %v121
    %342 = vmatprep.subr.mxu0 0.0
    %343 = vmatpush1.msra.mxu0 %v122
    %344 = vmatprep.subr.mxu0 0.0
    %345 = vmatpush1.msra.mxu0 %v123
    %346 = vmatprep.subr.mxu0 0.0
    %347 = vmatpush1.msra.mxu0 %v124
    %348 = vmatprep.subr.mxu0 0.0
    %349 = vmatpush1.msra.mxu0 %v125
    %350 = vmatprep.subr.mxu0 0.0
    %351 = vmatpush1.msra.mxu0 %v126
    %352 = vmatprep.subr.mxu0 0.0
    %353 = vmatpush1.msra.mxu0 %v127
    %354 = vmatprep.subr.mxu0 0.0
    %355 = vmatpush1.msra.mxu0 %v128
    %356 = vmatprep.subr.mxu0 0.0
    %357 = vmatpush1.msra.mxu0 %v129
    %358 = vmatprep.subr.mxu0 0.0
    %359 = vmatpush1.msra.mxu0 %v130
    %360 = vmatprep.subr.mxu0 0.0
    %361 = vmatpush1.msra.mxu0 %v131
    %362 = vmatprep.subr.mxu0 0.0
    %363 = vmatpush1.msra.mxu0 %v132
    %364 = vmatprep.subr.mxu0 0.0
    %365 = vmatpush1.msra.mxu0 %v133
    %366 = vmatprep.subr.mxu0 0.0
    %367 = vmatpush1.msra.mxu0 %v134
    %368 = vmatprep.subr.mxu0 0.0
    %369 = vmatpush1.msra.mxu0 %v135
    %370 = vmatprep.subr.mxu0 0.0
    %371 = vmatpush1.msra.mxu0 %v136
    %372 = vmatprep.subr.mxu0 0.0
    %373 = vmatpush1.msra.mxu0 %v137
    %374 = vmatprep.subr.mxu0 0.0
    %375 = vmatpush1.msra.mxu0 %v138
    %376 = vmatprep.subr.mxu0 0.0
    %377 = vmatpush1.msra.mxu0 %v139
    %378 = vmatprep.subr.mxu0 0.0
    %379 = vmatpush1.msra.mxu0 %v140
    %380 = vmatprep.subr.mxu0 0.0
    %381 = vmatpush1.msra.mxu0 %v141
    %382 = vmatprep.subr.mxu0 0.0
    %383 = vmatpush1.msra.mxu0 %v142
    %384 = vmatprep.subr.mxu0 0.0
    %385 = vmatpush1.msra.mxu0 %v143
    %386 = vmatprep.subr.mxu0 0.0
    %387 = vmatpush1.msra.mxu0 %v144
    %388 = vmatprep.mubr.f32.mxu0 %v46
    %389 = vmatmul.mubr.f32.gmra.mrb[0].mxu0 %v45
    %v390 = vpop.f32.mrb[0].mxu0
    %v391 = vadd.f32 %v321, %v390
    %v392 = vpop.f32.mrb[0].mxu0
    %393 = vdwg.mxu0
    %394 = vmatprep.subr.mxu0 0.0
    %395 = vmatpush1.msra.mxu0 %v145
    %396 = vmatprep.subr.mxu0 0.0
    %397 = vmatpush1.msra.mxu0 %v146
    %398 = vmatprep.subr.mxu0 0.0
    %399 = vmatpush1.msra.mxu0 %v147
    %400 = vmatprep.subr.mxu0 0.0
    %401 = vmatpush1.msra.mxu0 %v148
    %402 = vmatprep.subr.mxu0 0.0
    %403 = vmatpush1.msra.mxu0 %v149
    %404 = vmatprep.subr.mxu0 0.0
    %405 = vmatpush1.msra.mxu0 %v150
    %406 = vmatprep.subr.mxu0 0.0
    %407 = vmatpush1.msra.mxu0 %v151
    %408 = vmatprep.subr.mxu0 0.0
    %409 = vmatpush1.msra.mxu0 %v152
    %410 = vmatprep.subr.mxu0 0.0
    %411 = vmatpush1.msra.mxu0 %v153
    %412 = vmatprep.subr.mxu0 0.0
    %413 = vmatpush1.msra.mxu0 %v154
    %414 = vmatprep.subr.mxu0 0.0
    %415 = vmatpush1.msra.mxu0 %v155
    %416 = vmatprep.subr.mxu0 0.0
    %417 = vmatpush1.msra.mxu0 %v156
    %418 = vmatprep.subr.mxu0 0.0
    %419 = vmatpush1.msra.mxu0 %v157
    %420 = vmatprep.subr.mxu0 0.0
    %421 = vmatpush1.msra.mxu0 %v158
    %422 = vmatprep.subr.mxu0 0.0
    %423 = vmatpush1.msra.mxu0 %v159
    %424 = vmatprep.subr.mxu0 0.0
    %425 = vmatpush1.msra.mxu0 %v160
    %426 = vmatprep.subr.mxu0 0.0
    %427 = vmatpush1.msra.mxu0 %v161
    %428 = vmatprep.subr.mxu0 0.0
    %429 = vmatpush1.msra.mxu0 %v162
    %430 = vmatprep.subr.mxu0 0.0
    %431 = vmatpush1.msra.mxu0 %v163
    %432 = vmatprep.subr.mxu0 0.0
    %433 = vmatpush1.msra.mxu0 %v164
    %434 = vmatprep.subr.mxu0 0.0
    %435 = vmatpush1.msra.mxu0 %v165
    %436 = vmatprep.subr.mxu0 0.0
    %437 = vmatpush1.msra.mxu0 %v166
    %438 = vmatprep.subr.mxu0 0.0
    %439 = vmatpush1.msra.mxu0 %v167
    %440 = vmatprep.subr.mxu0 0.0
    %441 = vmatpush1.msra.mxu0 %v168
    %442 = vmatprep.subr.mxu0 0.0
    %443 = vmatpush1.msra.mxu0 %v169
    %444 = vmatprep.subr.mxu0 0.0
    %445 = vmatpush1.msra.mxu0 %v170
    %446 = vmatprep.subr.mxu0 0.0
    %447 = vmatpush1.msra.mxu0 %v171
    %448 = vmatprep.subr.mxu0 0.0
    %449 = vmatpush1.msra.mxu0 %v172
    %450 = vmatprep.subr.mxu0 0.0
    %451 = vmatpush1.msra.mxu0 %v173
    %452 = vmatprep.subr.mxu0 0.0
    %453 = vmatpush1.msra.mxu0 %v174
    %454 = vmatprep.subr.mxu0 0.0
    %455 = vmatpush1.msra.mxu0 %v175
    %456 = vmatprep.subr.mxu0 0.0
    %457 = vmatpush1.msra.mxu0 %v176
    %458 = vmatprep.mubr.f32.mxu0 %v48
    %459 = vmatmul.mubr.f32.gmra.mrb[0].mxu0 %v47
    %v460 = vpop.f32.mrb[0].mxu0
    %v461 = vadd.f32 %v391, %v460
    %v462 = vpop.f32.mrb[0].mxu0
    %463 = vdwg.mxu0
    %v464 = vmax.f32 %v461, 0.0
    %v465 = vld [vmem:[%s3] sm:$0xff]
    %v466 = vld [vmem:[%s3 + $0x8] sm:$0xff]
    %v467 = vld [vmem:[%s3 + $0x10] sm:$0xff]
    %v468 = vld [vmem:[%s3 + $0x18] sm:$0xff]
    %v469 = vld [vmem:[%s3 + $0x20] sm:$0xff]
    %v470 = vld [vmem:[%s3 + $0x28] sm:$0xff]
    %v471 = vld [vmem:[%s3 + $0x30] sm:$0xff]
    %v472 = vld [vmem:[%s3 + $0x38] sm:$0xff]
    %v473 = vld [vmem:[%s3 + $0x40] sm:$0xff]
    %v474 = vld [vmem:[%s3 + $0x48] sm:$0xff]
    %v475 = vld [vmem:[%s3 + $0x50] sm:$0xff]
    %v476 = vld [vmem:[%s3 + $0x58] sm:$0xff]
    %v477 = vld [vmem:[%s3 + $0x60] sm:$0xff]
    %v478 = vld [vmem:[%s3 + $0x68] sm:$0xff]
    %v479 = vld [vmem:[%s3 + $0x70] sm:$0xff]
    %v480 = vld [vmem:[%s3 + $0x78] sm:$0xff]
    %v481 = vld [vmem:[%s4] sm:$0x1]
    %v483 = vlaneseq
    %v484 = vshrl.u32 %v483, 7
    %v485 = vsub.s32 0, %v484
    %v486 = vrot.slane %v481, %v485
    %488 = vmatprep.subr.mxu0 0.0
    %489 = vmatpush1.msra.mxu0 %v465
    %490 = vmatprep.subr.mxu0 0.0
    %491 = vmatpush1.msra.mxu0 %v466
    %492 = vmatprep.subr.mxu0 0.0
    %493 = vmatpush1.msra.mxu0 %v467
    %494 = vmatprep.subr.mxu0 0.0
    %495 = vmatpush1.msra.mxu0 %v468
    %496 = vmatprep.subr.mxu0 0.0
    %497 = vmatpush1.msra.mxu0 %v469
    %498 = vmatprep.subr.mxu0 0.0
    %499 = vmatpush1.msra.mxu0 %v470
    %500 = vmatprep.subr.mxu0 0.0
    %501 = vmatpush1.msra.mxu0 %v471
    %502 = vmatprep.subr.mxu0 0.0
    %503 = vmatpush1.msra.mxu0 %v472
    %504 = vmatprep.subr.mxu0 0.0
    %505 = vmatpush1.msra.mxu0 %v473
    %506 = vmatprep.subr.mxu0 0.0
    %507 = vmatpush1.msra.mxu0 %v474
    %508 = vmatprep.subr.mxu0 0.0
    %509 = vmatpush1.msra.mxu0 %v475
    %510 = vmatprep.subr.mxu0 0.0
    %511 = vmatpush1.msra.mxu0 %v476
    %512 = vmatprep.subr.mxu0 0.0
    %513 = vmatpush1.msra.mxu0 %v477
    %514 = vmatprep.subr.mxu0 0.0
    %515 = vmatpush1.msra.mxu0 %v478
    %516 = vmatprep.subr.mxu0 0.0
    %517 = vmatpush1.msra.mxu0 %v479
    %518 = vmatprep.subr.mxu0 0.0
    %519 = vmatpush1.msra.mxu0 %v480
    %520 = vmatprep.subr.mxu0 0.0
    %521 = vmatpush1.msra.mxu0 0.0
    %522 = vmatprep.subr.mxu0 0.0
    %523 = vmatpush1.msra.mxu0 0.0
    %524 = vmatprep.subr.mxu0 0.0
    %525 = vmatpush1.msra.mxu0 0.0
    %526 = vmatprep.subr.mxu0 0.0
    %527 = vmatpush1.msra.mxu0 0.0
    %528 = vmatprep.subr.mxu0 0.0
    %529 = vmatpush1.msra.mxu0 0.0
    %530 = vmatprep.subr.mxu0 0.0
    %531 = vmatpush1.msra.mxu0 0.0
    %532 = vmatprep.subr.mxu0 0.0
    %533 = vmatpush1.msra.mxu0 0.0
    %534 = vmatprep.subr.mxu0 0.0
    %535 = vmatpush1.msra.mxu0 0.0
    %536 = vmatprep.subr.mxu0 0.0
    %537 = vmatpush1.msra.mxu0 0.0
    %538 = vmatprep.subr.mxu0 0.0
    %539 = vmatpush1.msra.mxu0 0.0
    %540 = vmatprep.subr.mxu0 0.0
    %541 = vmatpush1.msra.mxu0 0.0
    %542 = vmatprep.subr.mxu0 0.0
    %543 = vmatpush1.msra.mxu0 0.0
    %544 = vmatprep.subr.mxu0 0.0
    %545 = vmatpush1.msra.mxu0 0.0
    %546 = vmatprep.subr.mxu0 0.0
    %547 = vmatpush1.msra.mxu0 0.0
    %548 = vmatprep.subr.mxu0 0.0
    %549 = vmatpush1.msra.mxu0 0.0
    %550 = vmatprep.subr.mxu0 0.0
    %551 = vmatpush1.msra.mxu0 0.0
    %552 = vmatprep.mubr.f32.mxu0 0.0
    %553 = vmatmul.mubr.f32.gmra.mrb[0].mxu0 %v464
    %v554 = vpop.f32.mrb[0].mxu0
    %v555 = vadd.f32 %v486, %v554
    %v556 = vpop.f32.mrb[0].mxu0
    %557 = vdwg.mxu0
    %v558 = vmax.f32 %v555, 0.0
    %v559 = vld [vmem:[%s5] sm:$0xff]
    %v560 = vld [vmem:[%s5 + $0x8] sm:$0xff]
    %v561 = vld [vmem:[%s5 + $0x10] sm:$0xff]
    %v562 = vld [vmem:[%s5 + $0x18] sm:$0xff]
    %v563 = vld [vmem:[%s5 + $0x20] sm:$0xff]
    %v564 = vld [vmem:[%s5 + $0x28] sm:$0xff]
    %v565 = vld [vmem:[%s5 + $0x30] sm:$0xff]
    %v566 = vld [vmem:[%s5 + $0x38] sm:$0xff]
    %v567 = vld [vmem:[%s5 + $0x40] sm:$0xff]
    %v568 = vld [vmem:[%s5 + $0x48] sm:$0xff]
    %v569 = vld [vmem:[%s5 + $0x50] sm:$0xff]
    %v570 = vld [vmem:[%s5 + $0x58] sm:$0xff]
    %v571 = vld [vmem:[%s5 + $0x60] sm:$0xff]
    %v572 = vld [vmem:[%s5 + $0x68] sm:$0xff]
    %v573 = vld [vmem:[%s5 + $0x70] sm:$0xff]
    %v574 = vld [vmem:[%s5 + $0x78] sm:$0xff]
    %v575 = vld [vmem:[%s6] sm:$0x1]
    %v577 = vlaneseq
    %v578 = vshrl.u32 %v577, 7
    %v579 = vsub.s32 0, %v578
    %v580 = vrot.slane %v575, %v579
    %582 = vmatprep.subr.mxu0 0.0
    %583 = vmatpush1.msra.mxu0 %v559
    %584 = vmatprep.subr.mxu0 0.0
    %585 = vmatpush1.msra.mxu0 %v560
    %586 = vmatprep.subr.mxu0 0.0
    %587 = vmatpush1.msra.mxu0 %v561
    %588 = vmatprep.subr.mxu0 0.0
    %589 = vmatpush1.msra.mxu0 %v562
    %590 = vmatprep.subr.mxu0 0.0
    %591 = vmatpush1.msra.mxu0 %v563
    %592 = vmatprep.subr.mxu0 0.0
    %593 = vmatpush1.msra.mxu0 %v564
    %594 = vmatprep.subr.mxu0 0.0
    %595 = vmatpush1.msra.mxu0 %v565
    %596 = vmatprep.subr.mxu0 0.0
    %597 = vmatpush1.msra.mxu0 %v566
    %598 = vmatprep.subr.mxu0 0.0
    %599 = vmatpush1.msra.mxu0 %v567
    %600 = vmatprep.subr.mxu0 0.0
    %601 = vmatpush1.msra.mxu0 %v568
    %602 = vmatprep.subr.mxu0 0.0
    %603 = vmatpush1.msra.mxu0 %v569
    %604 = vmatprep.subr.mxu0 0.0
    %605 = vmatpush1.msra.mxu0 %v570
    %606 = vmatprep.subr.mxu0 0.0
    %607 = vmatpush1.msra.mxu0 %v571
    %608 = vmatprep.subr.mxu0 0.0
    %609 = vmatpush1.msra.mxu0 %v572
    %610 = vmatprep.subr.mxu0 0.0
    %611 = vmatpush1.msra.mxu0 %v573
    %612 = vmatprep.subr.mxu0 0.0
    %613 = vmatpush1.msra.mxu0 %v574
    %614 = vmatprep.subr.mxu0 0.0
    %615 = vmatpush1.msra.mxu0 0.0
    %616 = vmatprep.subr.mxu0 0.0
    %617 = vmatpush1.msra.mxu0 0.0
    %618 = vmatprep.subr.mxu0 0.0
    %619 = vmatpush1.msra.mxu0 0.0
    %620 = vmatprep.subr.mxu0 0.0
    %621 = vmatpush1.msra.mxu0 0.0
    %622 = vmatprep.subr.mxu0 0.0
    %623 = vmatpush1.msra.mxu0 0.0
    %624 = vmatprep.subr.mxu0 0.0
    %625 = vmatpush1.msra.mxu0 0.0
    %626 = vmatprep.subr.mxu0 0.0
    %627 = vmatpush1.msra.mxu0 0.0
    %628 = vmatprep.subr.mxu0 0.0
    %629 = vmatpush1.msra.mxu0 0.0
    %630 = vmatprep.subr.mxu0 0.0
    %631 = vmatpush1.msra.mxu0 0.0
    %632 = vmatprep.subr.mxu0 0.0
    %633 = vmatpush1.msra.mxu0 0.0
    %634 = vmatprep.subr.mxu0 0.0
    %635 = vmatpush1.msra.mxu0 0.0
    %636 = vmatprep.subr.mxu0 0.0
    %637 = vmatpush1.msra.mxu0 0.0
    %638 = vmatprep.subr.mxu0 0.0
    %639 = vmatpush1.msra.mxu0 0.0
    %640 = vmatprep.subr.mxu0 0.0
    %641 = vmatpush1.msra.mxu0 0.0
    %642 = vmatprep.subr.mxu0 0.0
    %643 = vmatpush1.msra.mxu0 0.0
    %644 = vmatprep.subr.mxu0 0.0
    %645 = vmatpush1.msra.mxu0 0.0
    %646 = vmatprep.mubr.f32.mxu0 0.0
    %647 = vmatmul.mubr.f32.gmra.mrb[0].mxu0 %v558
    %v648 = vpop.f32.mrb[0].mxu0
    %v649 = vadd.f32 %v580, %v648
    %v650 = vpop.f32.mrb[0].mxu0
    %651 = vdwg.mxu0
    %652 = vst [vmem:[#allocation5] sm:$0xff] %v649
    // Predicated region
    $region34: #{model_forward.1} parent=1 // pred_check
      _
    $region35: #{model_forward.1} parent=1 // pred_check_branch
      %654 = sbr.rel (0) target = $region37
    $region36: #{model_forward.1} parent=1 // pred_region
      %s656 = ssub.s32 128, 128
      %657 = vsyncadd [#allocation4], %s656
      %s659 = sshll.u32 [#allocation5], 4
      %s660 = int_to_ptr.vmem [resolvable:$true] %s659
      %662 = dma.vmem_to_hbm [thread:$0]  %s660, 128, %s7, [#allocation4]
    $region37: #{model_forward.1} parent=1 // pred_fallthru
      _
    // Predicated region
    $region38: #{model_forward.1} parent=1 // pred_check
      _
    $region39: #{model_forward.1} parent=1 // pred_check_branch
      %664 = sbr.rel (0) target = $region41
    $region40: #{model_forward.1} parent=1 // pred_region
      %665 = dma.done [#allocation4], 128
    $region41: #{model_forward.1} parent=1 // pred_fallthru
      _
    %666 = vsyncpa [#allocation3], 1
    %667 = vsyncpa [#allocation4], 1

</llo_original>
